<compile_context>
chip_gen: v7x
topology: tpu7x:2x2x1
jax: 0.10.0
libtpu: 0.0.40
codegen_flags: <defaults>
</compile_context>

<pallas_src>
import numpy as np
import jax
import jax.numpy as jnp
from jax import lax
from jax.experimental import pallas as pl
from jax.experimental.pallas import tpu as pltpu


def _make_rotation(x_dim: int, seed: int = 0):
    """Deterministically build the rotation buffers exactly like Rotate.__init__."""
    rng = np.random.RandomState(seed)
    A = rng.randn(x_dim, x_dim)
    M = (A + A.T) / np.sqrt(2.0)
    # Matches the PyTorch source (np.linalg.eig on a symmetric matrix). eigh
    # would be numerically sturdier, but we keep source semantics.
    eig, U = np.linalg.eig(M)
    U = np.real(U)
    rot = U.astype(np.float32)
    inv_rot = np.linalg.inv(U).astype(np.float32)
    return jnp.asarray(rot), jnp.asarray(inv_rot)


def _rotate_kernel(x_ref, w_ref, y_ref):
    # Y = X @ W with W already oriented (K, N): plain ((1,),(0,)) contraction,
    # feeds the MXU directly, no transpose / layout shuffle.
    y = jnp.dot(x_ref[...], w_ref[...], preferred_element_type=jnp.float32)
    y_ref[...] = y.astype(y_ref.dtype)


def _pack_factor(d: int) -> int:
    """Largest p such that p*d == 128 (full lane width). 1 if d doesn't divide 128."""
    if d <= 128 and 128 % d == 0:
        return 128 // d
    return 1


def rotate_forward(X, rot, *, tb: int = 4096, gridless_max_bytes: int = 8 << 20):
    """Pallas implementation of Rotate.forward: returns (X @ rot.T, zeros_like(X))."""
    B, D = X.shape
    pack = _pack_factor(D)

    if pack > 1 and B % pack == 0:
        # Lane-dense path: view X as (B/pack, pack*D) and use a block-diagonal
        # weight kron(I_pack, rot.T) so each packed row is [x_j @ rot.T]_j.
        Bp, Dp = B // pack, pack * D
        x_in = X.reshape(Bp, Dp)                                   # free view
        w = jnp.kron(jnp.eye(pack, dtype=rot.dtype), rot.T)        # (Dp, Dp)
    else:
        # Fallback: unpacked (stores masked at D<128 lanes, but always correct).
        Bp, Dp = B, D
        x_in = X
        w = rot.T

    out_shape = jax.ShapeDtypeStruct((Bp, Dp), X.dtype)
    itemsize = jnp.dtype(X.dtype).itemsize
    resident_bytes = (2 * Bp * Dp + Dp * Dp) * itemsize            # X + Y + W

    if resident_bytes <= gridless_max_bytes or Bp <= tb:
        # Gridless whole-array kernel: no pipelined-grid per-step overhead.
        y = pl.pallas_call(
            _rotate_kernel,
            out_shape=out_shape,
            in_specs=[
                pl.BlockSpec(memory_space=pltpu.MemorySpace.VMEM),  # X
                pl.BlockSpec(memory_space=pltpu.MemorySpace.VMEM),  # W
            ],
            out_specs=pl.BlockSpec(memory_space=pltpu.MemorySpace.VMEM),
        )(x_in, w)
    else:
        # Batch-tiled path: grid over packed rows, W resident as a single block.
        n_blocks = pl.cdiv(Bp, tb)
        if n_blocks > 1 and n_blocks % 2 == 1:
            # Nudge to an even block count so v7x's two TensorCores balance.
            n_blocks += 1
            tb = max(8, ((-(-Bp // n_blocks)) + 7) // 8 * 8)        # ceil, mult of 8
        grid = (pl.cdiv(Bp, tb),)
        y = pl.pallas_call(
            _rotate_kernel,
            out_shape=out_shape,
            grid_spec=pltpu.PrefetchScalarGridSpec(
                num_scalar_prefetch=0,
                grid=grid,
                in_specs=[
                    pl.BlockSpec((tb, Dp), lambda i: (i, 0)),       # X tile
                    pl.BlockSpec((Dp, Dp), lambda i: (0, 0)),       # W (resident)
                ],
                out_specs=pl.BlockSpec((tb, Dp), lambda i: (i, 0)),
            ),
            compiler_params=pltpu.CompilerParams(
                dimension_semantics=("parallel",),   # shard batch across TCs
            ),
        )(x_in, w)

    y = y.reshape(B, D)
    # Log-det placeholder is a compile-time constant; no reason to DMA zeros
    # out of the kernel — XLA materializes it essentially for free.
    return y, jnp.zeros_like(X)


def rotate_sample(X, inv_rot, *, tb: int = 4096, gridless_max_bytes: int = 8 << 20):
    """Pallas implementation of Rotate.sample: returns (X @ inv_rot.T, zeros_like(X))."""
    return rotate_forward(X, inv_rot, tb=tb, gridless_max_bytes=gridless_max_bytes)


if __name__ == "__main__":
    D = 32
    rot, inv_rot = _make_rotation(D, seed=0)

    key = jax.random.PRNGKey(0)
    kx, kc, ko = jax.random.split(key, 3)

    # --- Small batch (gridless, lane-packed (8,32) -> (2,128)) ---
    B = 8
    X = jax.random.normal(kx, (B, D), dtype=jnp.float32)
    cond = jax.random.normal(kc, (B, 4), dtype=jnp.float32)  # unused by forward; API parity

    Y, logdet = rotate_forward(X, rot)
    Y = jax.block_until_ready(Y)
    logdet = jax.block_until_ready(logdet)

    Y_ref = X @ rot.T
    assert Y.shape == (B, D) and logdet.shape == (B, D)
    assert bool(jnp.allclose(Y, Y_ref, atol=1e-4, rtol=1e-4))
    assert bool(jnp.all(logdet == 0))

    # --- Batch not divisible by pack factor -> unpacked fallback path ---
    Bo = 6
    Xo = jax.random.normal(ko, (Bo, D), dtype=jnp.float32)
    Yo, _ = rotate_forward(Xo, rot)
    Yo = jax.block_until_ready(Yo)
    assert bool(jnp.allclose(Yo, Xo @ rot.T, atol=1e-4, rtol=1e-4))

    # --- Tiled grid path (forced with a small tile; production default tb=4096) ---
    Bl = 2048
    Xl = jax.random.normal(kx, (Bl, D), dtype=jnp.float32)
    Yl, logdetl = rotate_forward(Xl, rot, tb=256, gridless_max_bytes=0)
    Yl = jax.block_until_ready(Yl)
    assert bool(jnp.allclose(Yl, Xl @ rot.T, atol=1e-4, rtol=1e-4))
    assert bool(jnp.all(jax.block_until_ready(logdetl) == 0))

    # --- sample() path uses the same kernel with inv_rot ---
    Xs, _ = rotate_sample(Y, inv_rot)
    jax.block_until_ready(Xs)

    print("KERNEL_OK")
</pallas_src>

<mosaic_0001>
module attributes {stable_mosaic.version = 11 : i64} {
  func.func @_rotate_kernel(%arg0: memref<2x128xf32, #tpu.memory_space<vmem>>, %arg1: memref<128x128xf32, #tpu.memory_space<vmem>>, %arg2: memref<2x128xf32, #tpu.memory_space<vmem>>) attributes {dimension_semantics = [], scalar_prefetch = 0 : i64, scratch_operands = 0 : i64, tpu.core_type = #tpu.core_type<tc>} {
    %c0 = arith.constant 0 : index
    %c0_0 = arith.constant 0 : index
    %0 = vector.load %arg0[%c0, %c0_0] : memref<2x128xf32, #tpu.memory_space<vmem>>, vector<2x128xf32>
    %c0_1 = arith.constant 0 : index
    %c0_2 = arith.constant 0 : index
    %1 = vector.load %arg1[%c0_1, %c0_2] : memref<128x128xf32, #tpu.memory_space<vmem>>, vector<128x128xf32>
    %cst = arith.constant dense<0.000000e+00> : vector<2x128xf32>
    %2 = tpu.matmul %0, %1, %cst {dimension_numbers = #tpu.dot_dimension_numbers<[1], [0], [0], [1], [0, 0, 1, 1], [], []>} : vector<2x128xf32>, vector<128x128xf32>, vector<2x128xf32> -> vector<2x128xf32>
    %c0_3 = arith.constant 0 : index
    %c0_4 = arith.constant 0 : index
    %3 = vector.load %arg2[%c0_3, %c0_4] : memref<2x128xf32, #tpu.memory_space<vmem>>, vector<2x128xf32>
    tpu.vector_store %arg2[%c0_3, %c0_4], %2 {strides = array<i32>} : memref<2x128xf32, #tpu.memory_space<vmem>>, vector<2x128xf32>,
    return
  }
}

</mosaic_0001>

<llo_original>
// kernel: tpu_custom_call.1
$region0: #{tpu_custom_call.1}
  #allocation0 [shape = 'u32[]', space=smem, size = 0x4, offset = 0x4, fixed_abs, tag = 'smem constant byte address 0x4 - core index']
  #allocation1 [shape = 'u32[144,128]{1,0:T(1,128)}', space=vmem, size = 0x12000, scoped, tag = 'internal scratch']
  %s0 = inlined_call_operand.hbm [shape: f32[2,128], index: 0, kind: input, shape index: {}]
  %s1 = inlined_call_operand.hbm [shape: f32[128,128], index: 1, kind: input, shape index: {}]
  %s2 = inlined_call_operand.hbm [shape: f32[2,128], index: 2, kind: output, shape index: {}]
  %s3 = sld [smem:[#allocation0]]
  $region26: #{tpu_custom_call.1} parent=0
    _
  %s5 = ssub.s32 1, %s3
  %s6 = scalar_select 0, %s5, %s3
  $region1: #{tpu_custom_call.1} parent=0
    #allocation2 [shape = 'u8[1024]{0}', space=vmem, size = 0x400, scoped, tag = 'input window, operand 0, single buffered']
    #allocation3 [shape = 's32[1]{0}', space=sflag, size = 0x4, scoped, tag = 'scoped memory for tpu_custom_call.1']
    #allocation4 [shape = 's32[1]{0}', space=sflag, size = 0x4, scoped, tag = 'scoped memory for tpu_custom_call.1']
    #allocation5 [shape = 'u8[65536]{0}', space=vmem, size = 0x10000, scoped, tag = 'input window, operand 1, single buffered']
    #allocation6 [shape = 's32[1]{0}', space=sflag, size = 0x4, scoped, tag = 'scoped memory for tpu_custom_call.1']
    #allocation7 [shape = 'u8[1024]{0}', space=vmem, size = 0x400, scoped, tag = 'output window, operand 0, single buffered']
    %7 = vsyncpa [#allocation3], 0
    %8 = vsyncpa [#allocation6], 0
    %9 = vsyncpa [#allocation4], 0
    // Predicated region
    $region2: #{tpu_custom_call.1} parent=1 // pred_check
      _
    $region3: #{tpu_custom_call.1} parent=1 // pred_check_branch
      %11 = sbr.rel (0) target = $region5
    $region4: #{tpu_custom_call.1} parent=1 // pred_region
      %s13 = ssub.s32 32, 32
      %14 = vsyncadd [#allocation3], %s13
      %s16 = sshll.u32 [#allocation2], 4
      %s17 = int_to_ptr.vmem [resolvable:$true] %s16
      %19 = dma.hbm_to_vmem [thread:$0]  %s0, 32, %s17, [#allocation3]
    $region5: #{tpu_custom_call.1} parent=1 // pred_fallthru
      _
    // Predicated region
    $region6: #{tpu_custom_call.1} parent=1 // pred_check
      _
    $region7: #{tpu_custom_call.1} parent=1 // pred_check_branch
      %21 = sbr.rel (0) target = $region9
    $region8: #{tpu_custom_call.1} parent=1 // pred_region
      %s23 = ssub.s32 2048, 2048
      %24 = vsyncadd [#allocation6], %s23
      %s25 = sshll.u32 [#allocation5], 4
      %s26 = int_to_ptr.vmem [resolvable:$true] %s25
      %31 = dma.hbm_to_vmem [thread:$0]  %s1, 2048, %s26, [#allocation6], 128, 128, 8
    $region9: #{tpu_custom_call.1} parent=1 // pred_fallthru
      _
    // Predicated region
    $region10: #{tpu_custom_call.1} parent=1 // pred_check
      _
    $region11: #{tpu_custom_call.1} parent=1 // pred_check_branch
      %33 = sbr.rel (0) target = $region13
    $region12: #{tpu_custom_call.1} parent=1 // pred_region
      %34 = dma.done [#allocation3], 32
    $region13: #{tpu_custom_call.1} parent=1 // pred_fallthru
      _
    // Predicated region
    $region14: #{tpu_custom_call.1} parent=1 // pred_check
      _
    $region15: #{tpu_custom_call.1} parent=1 // pred_check_branch
      %36 = sbr.rel (0) target = $region17
    $region16: #{tpu_custom_call.1} parent=1 // pred_region
      %37 = dma.done [#allocation6], 2048
    $region17: #{tpu_custom_call.1} parent=1 // pred_fallthru
      _
    %v38 = vld [vmem:[#allocation2] sm:$0x3]
    %v39 = vld [vmem:[#allocation5] sm:$0xff]
    %v40 = vld [vmem:[#allocation5 + $0x8] sm:$0xff]
    %v41 = vld [vmem:[#allocation5 + $0x10] sm:$0xff]
    %v42 = vld [vmem:[#allocation5 + $0x18] sm:$0xff]
    %v43 = vld [vmem:[#allocation5 + $0x20] sm:$0xff]
    %v44 = vld [vmem:[#allocation5 + $0x28] sm:$0xff]
    %v45 = vld [vmem:[#allocation5 + $0x30] sm:$0xff]
    %v46 = vld [vmem:[#allocation5 + $0x38] sm:$0xff]
    %v47 = vld [vmem:[#allocation5 + $0x40] sm:$0xff]
    %v48 = vld [vmem:[#allocation5 + $0x48] sm:$0xff]
    %v49 = vld [vmem:[#allocation5 + $0x50] sm:$0xff]
    %v50 = vld [vmem:[#allocation5 + $0x58] sm:$0xff]
    %v51 = vld [vmem:[#allocation5 + $0x60] sm:$0xff]
    %v52 = vld [vmem:[#allocation5 + $0x68] sm:$0xff]
    %v53 = vld [vmem:[#allocation5 + $0x70] sm:$0xff]
    %v54 = vld [vmem:[#allocation5 + $0x78] sm:$0xff]
    %55 = vmatprep.subr.mxu0 0.0
    %56 = vmatpush1.msra.mxu0 %v39
    %57 = vmatprep.subr.mxu0 0.0
    %58 = vmatpush1.msra.mxu0 %v40
    %59 = vmatprep.subr.mxu0 0.0
    %60 = vmatpush1.msra.mxu0 %v41
    %61 = vmatprep.subr.mxu0 0.0
    %62 = vmatpush1.msra.mxu0 %v42
    %63 = vmatprep.subr.mxu0 0.0
    %64 = vmatpush1.msra.mxu0 %v43
    %65 = vmatprep.subr.mxu0 0.0
    %66 = vmatpush1.msra.mxu0 %v44
    %67 = vmatprep.subr.mxu0 0.0
    %68 = vmatpush1.msra.mxu0 %v45
    %69 = vmatprep.subr.mxu0 0.0
    %70 = vmatpush1.msra.mxu0 %v46
    %71 = vmatprep.subr.mxu0 0.0
    %72 = vmatpush1.msra.mxu0 %v47
    %73 = vmatprep.subr.mxu0 0.0
    %74 = vmatpush1.msra.mxu0 %v48
    %75 = vmatprep.subr.mxu0 0.0
    %76 = vmatpush1.msra.mxu0 %v49
    %77 = vmatprep.subr.mxu0 0.0
    %78 = vmatpush1.msra.mxu0 %v50
    %79 = vmatprep.subr.mxu0 0.0
    %80 = vmatpush1.msra.mxu0 %v51
    %81 = vmatprep.subr.mxu0 0.0
    %82 = vmatpush1.msra.mxu0 %v52
    %83 = vmatprep.subr.mxu0 0.0
    %84 = vmatpush1.msra.mxu0 %v53
    %85 = vmatprep.subr.mxu0 0.0
    %86 = vmatpush1.msra.mxu0 %v54
    %87 = vmatprep.subr.mxu0 0.0
    %88 = vmatpush1.msra.mxu0 0.0
    %89 = vmatprep.subr.mxu0 0.0
    %90 = vmatpush1.msra.mxu0 0.0
    %91 = vmatprep.subr.mxu0 0.0
    %92 = vmatpush1.msra.mxu0 0.0
    %93 = vmatprep.subr.mxu0 0.0
    %94 = vmatpush1.msra.mxu0 0.0
    %95 = vmatprep.subr.mxu0 0.0
    %96 = vmatpush1.msra.mxu0 0.0
    %97 = vmatprep.subr.mxu0 0.0
    %98 = vmatpush1.msra.mxu0 0.0
    %99 = vmatprep.subr.mxu0 0.0
    %100 = vmatpush1.msra.mxu0 0.0
    %101 = vmatprep.subr.mxu0 0.0
    %102 = vmatpush1.msra.mxu0 0.0
    %103 = vmatprep.subr.mxu0 0.0
    %104 = vmatpush1.msra.mxu0 0.0
    %105 = vmatprep.subr.mxu0 0.0
    %106 = vmatpush1.msra.mxu0 0.0
    %107 = vmatprep.subr.mxu0 0.0
    %108 = vmatpush1.msra.mxu0 0.0
    %109 = vmatprep.subr.mxu0 0.0
    %110 = vmatpush1.msra.mxu0 0.0
    %111 = vmatprep.subr.mxu0 0.0
    %112 = vmatpush1.msra.mxu0 0.0
    %113 = vmatprep.subr.mxu0 0.0
    %114 = vmatpush1.msra.mxu0 0.0
    %115 = vmatprep.subr.mxu0 0.0
    %116 = vmatpush1.msra.mxu0 0.0
    %117 = vmatprep.subr.mxu0 0.0
    %118 = vmatpush1.msra.mxu0 0.0
    %119 = vmatprep.mubr.f32.mxu0 0.0
    %120 = vmatmul.mubr.f32.gmra.mrb[0].mxu0 %v38
    %v121 = vpop.f32.mrb[0].mxu0
    %v122 = vadd.f32 0.0, %v121
    %v123 = vpop.f32.mrb[0].mxu0
    %124 = vdwg.mxu0
    %125 = vst [vmem:[#allocation7] sm:$0x3] %v122
    // Predicated region
    $region18: #{tpu_custom_call.1} parent=1 // pred_check
      _
    $region19: #{tpu_custom_call.1} parent=1 // pred_check_branch
      %127 = sbr.rel (0) target = $region21
    $region20: #{tpu_custom_call.1} parent=1 // pred_region
      %s129 = ssub.s32 32, 32
      %130 = vsyncadd [#allocation4], %s129
      %s132 = sshll.u32 [#allocation7], 4
      %s133 = int_to_ptr.vmem [resolvable:$true] %s132
      %135 = dma.vmem_to_hbm [thread:$0]  %s133, 32, %s2, [#allocation4]
    $region21: #{tpu_custom_call.1} parent=1 // pred_fallthru
      _
    // Predicated region
    $region22: #{tpu_custom_call.1} parent=1 // pred_check
      _
    $region23: #{tpu_custom_call.1} parent=1 // pred_check_branch
      %137 = sbr.rel (0) target = $region25
    $region24: #{tpu_custom_call.1} parent=1 // pred_region
      %138 = dma.done [#allocation4], 32
    $region25: #{tpu_custom_call.1} parent=1 // pred_fallthru
      _
    %139 = vsyncpa [#allocation3], 1
    %140 = vsyncpa [#allocation6], 1
    %141 = vsyncpa [#allocation4], 1

</llo_original>
